<compile_context>
chip_gen: v7x
topology: tpu7x:2x2x1
jax: 0.10.0
libtpu: 0.0.40
codegen_flags: <defaults>
</compile_context>

<pallas_src>
import math
from functools import partial

import numpy as np
import jax
import jax.numpy as jnp
from jax import lax
from jax.experimental import pallas as pl
from jax.experimental.pallas import tpu as pltpu

# ----------------------------- configuration ------------------------------- #
NUM_CLASS   = 10
INPUT_SIZE  = 32
ENC_SIZE    = 32
HIDDEN_SIZE = 64
N_LAYERS    = 1
N_HEADS     = 4
T           = 5          # yc2bb_num_frm
NUM_FRM     = T
P           = 20         # num_proposals
O           = 5          # object slots per sample

TP  = T * P                              # 100 (kept as full-dim lanes; overhead-bound kernel)
NC1 = NUM_CLASS + 1                      # 11 embedding rows
KP  = max(8, -(-2 * O // 8) * 8)         # 16 padded key rows (2*O = 10 real)


# --------------------------- fused Pallas kernel ---------------------------- #
def _dvsa_fused_kernel(obj_ref, x_ref, w_ref, b_ref, emb_ref, o_ref, *, inv_sqrt_c):
    # obj_ref : SMEM (B, 2*O) int32  -- scalar-prefetched object ids (whole array)
    # x_ref   : VMEM (2, C_in, TP)   -- raw features of this pair (no NCHW transposes)
    # w_ref   : VMEM (E, C_in)       -- feat_enc Linear weight (PyTorch layout)
    # b_ref   : VMEM (E, 1)          -- feat_enc Linear bias
    # emb_ref : VMEM (NC1, E)        -- full obj_emb table
    # o_ref   : VMEM (2, KP, TP)     -- sigmoid scores; rows >= 2*O are 0.5-padding
    b = pl.program_id(0)

    # --- feat_enc: relu(W x + b) for both samples; bf16 MXU inputs, f32 accumulation.
    w = w_ref[...].astype(jnp.bfloat16)
    bias = b_ref[...]                                   # (E, 1) lane-broadcast add
    enc0 = jnp.maximum(
        jnp.dot(w, x_ref[0, :, :].astype(jnp.bfloat16),
                preferred_element_type=jnp.float32) + bias, 0.0)
    enc1 = jnp.maximum(
        jnp.dot(w, x_ref[1, :, :].astype(jnp.bfloat16),
                preferred_element_type=jnp.float32) + bias, 0.0)

    # --- in-kernel obj_emb gather:  K = [emb[obj[b,0,:]]; emb[obj[b,1,:]]; 0-pad]
    # Built as a one-hot (KP, NC1) matrix times the table (pure vreg ops + tiny dot),
    # so no wrapper-side gather/concat/pad and no dynamic-slice lowering concerns.
    row = lax.broadcasted_iota(jnp.int32, (KP, NC1), 0)
    col = lax.broadcasted_iota(jnp.int32, (KP, NC1), 1)
    onehot = jnp.zeros((KP, NC1), jnp.float32)
    for r in range(2 * O):                              # static, unrolled (10 iters)
        idx = obj_ref[b, r]                             # SMEM scalar read
        onehot = jnp.where((row == r) & (col == idx), 1.0, onehot)
    k = jnp.dot(onehot, emb_ref[...], preferred_element_type=jnp.float32)   # (KP, E)
    kb = k.astype(jnp.bfloat16)

    # --- attention scores; sigmoid(z) = 0.5*tanh(z/2)+0.5 keeps it on the (idle) EUP.
    alpha = 0.5 * inv_sqrt_c
    s0 = jnp.dot(kb, enc0.astype(jnp.bfloat16), preferred_element_type=jnp.float32)
    s1 = jnp.dot(kb, enc1.astype(jnp.bfloat16), preferred_element_type=jnp.float32)
    o_ref[0, :, :] = 0.5 * jnp.tanh(alpha * s0) + 0.5
    o_ref[1, :, :] = 0.5 * jnp.tanh(alpha * s1) + 0.5


def dvsa_attn_pallas(x, obj_ids, fe_w, fe_b, obj_emb):
    """Fused feat_enc + obj_emb gather + attention scores, batched over pairs.

    x       : (B, 2, C_in, T*P) f32   raw features (free reshape of NCHW, no transposes)
    obj_ids : (B, 2*O) int32          object ids per pair (scalar-prefetched to SMEM)
    returns : (B, 2, KP, T*P) f32 sigmoid scores; rows >= 2*O along axis 2 are padding.
    """
    B, _, C_in, tp = x.shape
    E = fe_w.shape[0]
    nc1 = obj_emb.shape[0]
    kern = partial(_dvsa_fused_kernel, inv_sqrt_c=1.0 / math.sqrt(E))
    return pl.pallas_call(
        kern,
        out_shape=jax.ShapeDtypeStruct((B, 2, KP, tp), jnp.float32),
        grid_spec=pltpu.PrefetchScalarGridSpec(
            num_scalar_prefetch=1,
            grid=(B,),
            in_specs=[
                pl.BlockSpec((None, 2, C_in, tp), lambda b, obj: (b, 0, 0, 0)),
                pl.BlockSpec((E, C_in),           lambda b, obj: (0, 0)),
                pl.BlockSpec((E, 1),              lambda b, obj: (0, 0)),
                pl.BlockSpec((nc1, E),            lambda b, obj: (0, 0)),
            ],
            out_specs=pl.BlockSpec((None, 2, KP, tp), lambda b, obj: (b, 0, 0, 0)),
        ),
        compiler_params=pltpu.CompilerParams(
            dimension_semantics=("parallel",)),   # pairs shard across TCs on v7x
    )(obj_ids, x, fe_w, fe_b.reshape(E, 1), obj_emb)


# --------------------------- plain-JAX glue pieces --------------------------- #
def positional_encoding(length, dim):
    pos = np.arange(length)[:, None].astype(np.float32)
    i = np.arange(dim)[None, :].astype(np.float32)
    angle = pos / np.power(10000.0, (2.0 * (i // 2)) / dim)
    pe = np.where((np.arange(dim)[None, :] % 2) == 0, np.sin(angle), np.cos(angle))
    return jnp.asarray(pe, jnp.float32)


def layer_norm(x, g, b, eps=1e-6):
    mu = jnp.mean(x, axis=-1, keepdims=True)
    var = jnp.mean((x - mu) ** 2, axis=-1, keepdims=True)
    return (x - mu) / jnp.sqrt(var + eps) * g + b


def transformer_encode(tf_params, x):
    # TODO(synk): the repo's `Transformer` class is not shipped with the module; this is a
    # standard post-LN MHSA encoder with sinusoidal positions (tiny, not a hot path).
    B, Lq, E = x.shape
    H = N_HEADS
    dh = E // H
    x = x + positional_encoding(Lq, E)[None]
    for layer in tf_params:
        q = x @ layer["wq"]
        k = x @ layer["wk"]
        v = x @ layer["wv"]

        def split_heads(t):
            return t.reshape(B, Lq, H, dh).transpose(0, 2, 1, 3)

        qh, kh, vh = split_heads(q), split_heads(k), split_heads(v)
        scores = jnp.einsum("bhqd,bhkd->bhqk", qh, kh) / math.sqrt(dh)
        a = jax.nn.softmax(scores, axis=-1)
        o = jnp.einsum("bhqk,bhkd->bhqd", a, vh).transpose(0, 2, 1, 3).reshape(B, Lq, E)
        o = o @ layer["wo"]
        x = layer_norm(x + o, layer["ln1_g"], layer["ln1_b"])
        f = jax.nn.relu(x @ layer["w1"] + layer["b1"]) @ layer["w2"] + layer["b2"]
        x = layer_norm(x + f, layer["ln2_g"], layer["ln2_b"])
    return x


def init_params(key):
    def norm(k, shape, scale=0.05):
        return scale * jax.random.normal(k, shape, jnp.float32)

    ks = list(jax.random.split(key, 8 + 8 * N_LAYERS))
    p = {
        "fe_w": norm(ks[0], (ENC_SIZE, INPUT_SIZE)),      # PyTorch Linear layout (E, C_in)
        "fe_b": norm(ks[4], (ENC_SIZE,)),
        "obj_emb": norm(ks[1], (NUM_CLASS + 1, ENC_SIZE)),
        "fc1_w": norm(ks[2], (ENC_SIZE * 2, ENC_SIZE // 2)),
        "fc1_b": jnp.zeros((ENC_SIZE // 2,), jnp.float32),
        "fc2_w": norm(ks[3], (ENC_SIZE // 2, 5)),
        "fc2_b": jnp.zeros((5,), jnp.float32),
    }
    layers = []
    idx = 8
    for _ in range(N_LAYERS):
        layers.append({
            "wq": norm(ks[idx + 0], (ENC_SIZE, ENC_SIZE)),
            "wk": norm(ks[idx + 1], (ENC_SIZE, ENC_SIZE)),
            "wv": norm(ks[idx + 2], (ENC_SIZE, ENC_SIZE)),
            "wo": norm(ks[idx + 3], (ENC_SIZE, ENC_SIZE)),
            "ln1_g": jnp.ones((ENC_SIZE,), jnp.float32),
            "ln1_b": jnp.zeros((ENC_SIZE,), jnp.float32),
            "w1": norm(ks[idx + 4], (ENC_SIZE, HIDDEN_SIZE)),
            "b1": jnp.zeros((HIDDEN_SIZE,), jnp.float32),
            "w2": norm(ks[idx + 5], (HIDDEN_SIZE, ENC_SIZE)),
            "b2": jnp.zeros((ENC_SIZE,), jnp.float32),
            "ln2_g": jnp.ones((ENC_SIZE,), jnp.float32),
            "ln2_b": jnp.zeros((ENC_SIZE,), jnp.float32),
        })
        idx += 8
    p["tf"] = layers
    return p


# ------------------------------- full forward -------------------------------- #
@partial(jax.jit, static_argnums=(3, 4))
def dvsa_forward(params, x_o, obj, num_pos, num_neg):
    """Training branch (load_type='train'), has_loss_weighting=True. Dropout=identity."""
    C_in, t, p = x_o.shape[1], x_o.shape[2], x_o.shape[3]
    tp = t * p

    # Only metadata reshapes before the kernel — no pad/concat/gather XLA launches.
    x_b = x_o.reshape(1, 2, C_in, tp)
    obj_b = obj.astype(jnp.int32).reshape(1, 2 * O)

    # ---- single fused Pallas kernel: feat_enc + obj_emb gather + attention scores ----
    sig = dvsa_attn_pallas(x_b, obj_b, params["fe_w"], params["fe_b"],
                           params["obj_emb"])[0]        # (2, KP, tp)
    # Padded rows (>= 2*O) hold sigmoid(0)=0.5 garbage -> only exact windows are sliced.
    a00 = sig[0, :O]                 # sample 0 : K0 @ enc(X0)
    a01 = sig[1, :O]                 # sample 1 : K0 @ enc(X1)
    a10 = sig[0, O:2 * O]            # sample 2 : K1 @ enc(X0)
    attn_w = jnp.stack([a00, a01, a10])                 # (3, O, T*P)

    # ---- object interaction transformer + fc (tiny, plain JAX, all under jit) ----
    k0 = params["obj_emb"][obj[0]]                      # (O, E) — feeds transformer only
    feat = k0[None, :num_pos]                           # (1, num_pos, E)
    emb = transformer_encode(params["tf"], feat)        # (1, num_pos, E)
    emb = jnp.concatenate([emb, feat], axis=2)          # (1, num_pos, 2E)
    h = jax.nn.relu(emb @ params["fc1_w"] + params["fc1_b"])
    seg = jax.nn.sigmoid(h @ params["fc2_w"] + params["fc2_b"])   # (1, num_pos, 5)

    itv = math.ceil(t / 5)
    tmp = []
    for i in range(5):
        l = min(itv * (i + 1), t) - itv * i
        if l > 0:
            tmp.append(jnp.broadcast_to(seg[:, :, i:i + 1], (1, num_pos, l)))
    seg_t = jnp.concatenate(tmp, axis=2)[0]             # (num_pos, T)
    assert seg_t.shape[1] == NUM_FRM
    loss_weigh = jnp.mean(seg_t, axis=0)                # (T,)
    loss_weigh = jnp.concatenate([loss_weigh, loss_weigh])[:, None]   # (2T, 1)

    # ---- attention reductions (static num_pos / num_neg shapes) ----
    # TODO(synk): optionally fuse these max/mean reductions into the kernel (XLU strided
    # lane reduce over groups of P lanes) if end-to-end step latency becomes the metric.
    attn_w4 = attn_w.reshape(3, O, t, p)
    pos_m  = jnp.mean(jnp.max(attn_w4[0, :num_pos], axis=2), axis=0)   # (T,)
    neg1_m = jnp.mean(jnp.max(attn_w4[1, :num_pos], axis=2), axis=0)
    neg2_m = jnp.mean(jnp.max(attn_w4[2, :num_neg], axis=2), axis=0)
    out = jnp.concatenate([jnp.stack([pos_m, neg1_m], axis=1),
                           jnp.stack([pos_m, neg2_m], axis=1)], axis=0)  # (2T, 2)
    return out, loss_weigh, attn_w


# ----------------------------------- main ------------------------------------ #
if __name__ == "__main__":
    key = jax.random.PRNGKey(0)
    pkey, xkey, bkey, okey = jax.random.split(key, 4)
    params = init_params(pkey)

    # example inputs (PyTorch receives these wrapped in a list: x_o[0], obj[0])
    x_o = jax.random.normal(xkey, (2, INPUT_SIZE, T, P), jnp.float32)
    obj_np = np.array([[1, 3, 5, NUM_CLASS, NUM_CLASS],          # 3 positive objects
                       [2, 7, NUM_CLASS, NUM_CLASS, NUM_CLASS]],  # 2 negative objects
                      dtype=np.int32)
    obj = jnp.asarray(obj_np)

    # Host-side static object counts (mirrors the PyTorch .item()), kept OUTSIDE the
    # jitted region so the compiled forward has no device->host sync.
    num_pos = int(np.sum(obj_np[0] < NUM_CLASS))
    num_neg = int(np.sum(obj_np[1] < NUM_CLASS))

    out, loss_weigh, attn_w = dvsa_forward(params, x_o, obj, num_pos, num_neg)
    jax.block_until_ready((out, loss_weigh, attn_w))

    # ---- sanity check vs pure-f32 JAX reference (bf16 MXU inputs -> relaxed tol) ----
    x_perm = jnp.transpose(x_o, (0, 2, 3, 1))                             # (2,T,P,C)
    enc = jax.nn.relu(x_perm @ params["fe_w"].T + params["fe_b"])         # (2,T,P,E)
    enc = jnp.transpose(enc, (0, 3, 1, 2)).reshape(2, ENC_SIZE, T * P)    # (2,E,TP)
    x3 = jnp.stack([enc[0], enc[1], enc[0]])
    key3 = jnp.stack([params["obj_emb"][obj[0]],
                      params["obj_emb"][obj[0]],
                      params["obj_emb"][obj[1]]])
    ref_attn = jax.nn.sigmoid(
        jnp.einsum("noc,nct->not", key3, x3) / math.sqrt(ENC_SIZE))
    np.testing.assert_allclose(np.asarray(attn_w), np.asarray(ref_attn),
                               rtol=1e-2, atol=1e-2)

    ref4 = ref_attn.reshape(3, O, T, P)
    rp  = jnp.mean(jnp.max(ref4[0, :num_pos], axis=2), axis=0)
    rn1 = jnp.mean(jnp.max(ref4[1, :num_pos], axis=2), axis=0)
    rn2 = jnp.mean(jnp.max(ref4[2, :num_neg], axis=2), axis=0)
    ref_out = jnp.concatenate([jnp.stack([rp, rn1], axis=1),
                               jnp.stack([rp, rn2], axis=1)], axis=0)
    np.testing.assert_allclose(np.asarray(out), np.asarray(ref_out),
                               rtol=1e-2, atol=1e-2)
    assert out.shape == (2 * T, 2) and loss_weigh.shape == (2 * T, 1)

    # ---- batched-pairs path: many pairs in ONE pallas_call, "parallel" grid axis ----
    Bp = 4
    xb = jax.random.normal(bkey, (Bp, 2, INPUT_SIZE, T * P), jnp.float32)
    objb = jax.random.randint(okey, (Bp, 2, O), 0, NUM_CLASS + 1).astype(jnp.int32)
    sig_b = jax.jit(dvsa_attn_pallas)(xb, objb.reshape(Bp, 2 * O),
                                      params["fe_w"], params["fe_b"], params["obj_emb"])
    jax.block_until_ready(sig_b)

    enc_b = jax.nn.relu(jnp.einsum("ec,bsct->bset", params["fe_w"], xb)
                        + params["fe_b"][None, None, :, None])            # (Bp,2,E,TP)
    keys_b = params["obj_emb"][objb]                                      # (Bp,2,O,E)
    ref_b = jax.nn.sigmoid(jnp.einsum("bkoe,bset->bskot", keys_b, enc_b)
                           / math.sqrt(ENC_SIZE)).reshape(Bp, 2, 2 * O, T * P)
    np.testing.assert_allclose(np.asarray(sig_b[:, :, :2 * O, :]), np.asarray(ref_b),
                               rtol=1e-2, atol=1e-2)

    print("KERNEL_OK")
</pallas_src>

<mosaic_0001>
module attributes {stable_mosaic.version = 11 : i64} {
  func.func @_dvsa_fused_kernel(%arg0: i32, %arg1: memref<1x10xi32, #tpu.memory_space<smem>>, %arg2: memref<1x2x32x100xf32, #tpu.memory_space<vmem>>, %arg3: memref<32x32xf32, #tpu.memory_space<vmem>>, %arg4: memref<32x1xf32, #tpu.memory_space<vmem>>, %arg5: memref<11x32xf32, #tpu.memory_space<vmem>>, %arg6: memref<1x2x16x100xf32, #tpu.memory_space<vmem>>) attributes {dimension_semantics = [#tpu.dimension_semantics<parallel>], iteration_bounds = array<i64: 1>, scalar_prefetch = 1 : i64, scratch_operands = 0 : i64, tpu.core_type = #tpu.core_type<tc>, window_params = [{transform_indices = @transform_0, window_bounds = array<i64: 1, 2, 32, 100>}, {pipeline_mode = #tpu.pipeline_mode<synchronous>, transform_indices = @transform_1, window_bounds = array<i64: 32, 32>}, {pipeline_mode = #tpu.pipeline_mode<synchronous>, transform_indices = @transform_2, window_bounds = array<i64: 32, 1>}, {pipeline_mode = #tpu.pipeline_mode<synchronous>, transform_indices = @transform_3, window_bounds = array<i64: 11, 32>}, {transform_indices = @transform_4, window_bounds = array<i64: 1, 2, 16, 100>}]} {
    %c0 = arith.constant 0 : index
    %c0_0 = arith.constant 0 : index
    %0 = vector.load %arg3[%c0, %c0_0] : memref<32x32xf32, #tpu.memory_space<vmem>>, vector<32x32xf32>
    %1 = arith.truncf %0 : vector<32x32xf32> to vector<32x32xbf16>
    %c0_1 = arith.constant 0 : index
    %c0_2 = arith.constant 0 : index
    %2 = vector.load %arg4[%c0_1, %c0_2] : memref<32x1xf32, #tpu.memory_space<vmem>>, vector<32x1xf32>
    %c0_3 = arith.constant 0 : index
    %c0_4 = arith.constant 0 : index
    %c0_5 = arith.constant 0 : index
    %c0_6 = arith.constant 0 : index
    %3 = vector.load %arg2[%c0_3, %c0_4, %c0_5, %c0_6] : memref<1x2x32x100xf32, #tpu.memory_space<vmem>>, vector<1x1x32x100xf32>
    %4 = vector.shape_cast %3 : vector<1x1x32x100xf32> to vector<32x100xf32>
    %5 = arith.truncf %4 : vector<32x100xf32> to vector<32x100xbf16>
    %cst = arith.constant dense<0.000000e+00> : vector<32x100xf32>
    %6 = tpu.matmul %1, %5, %cst {dimension_numbers = #tpu.dot_dimension_numbers<[1], [0], [0], [1], [0, 0, 1, 1], [], []>} : vector<32x32xbf16>, vector<32x100xbf16>, vector<32x100xf32> -> vector<32x100xf32>
    %7 = vector.broadcast %2 : vector<32x1xf32> to vector<32x100xf32>
    %8 = arith.addf %6, %7 : vector<32x100xf32>
    %cst_7 = arith.constant 0.000000e+00 : f32
    %9 = vector.broadcast %cst_7 : f32 to vector<32x100xf32>
    %10 = arith.maximumf %8, %9 : vector<32x100xf32>
    %c0_8 = arith.constant 0 : index
    %c1 = arith.constant 1 : index
    %c0_9 = arith.constant 0 : index
    %c0_10 = arith.constant 0 : index
    %11 = vector.load %arg2[%c0_8, %c1, %c0_9, %c0_10] : memref<1x2x32x100xf32, #tpu.memory_space<vmem>>, vector<1x1x32x100xf32>
    %12 = vector.shape_cast %11 : vector<1x1x32x100xf32> to vector<32x100xf32>
    %13 = arith.truncf %12 : vector<32x100xf32> to vector<32x100xbf16>
    %cst_11 = arith.constant dense<0.000000e+00> : vector<32x100xf32>
    %14 = tpu.matmul %1, %13, %cst_11 {dimension_numbers = #tpu.dot_dimension_numbers<[1], [0], [0], [1], [0, 0, 1, 1], [], []>} : vector<32x32xbf16>, vector<32x100xbf16>, vector<32x100xf32> -> vector<32x100xf32>
    %15 = vector.broadcast %2 : vector<32x1xf32> to vector<32x100xf32>
    %16 = arith.addf %14, %15 : vector<32x100xf32>
    %cst_12 = arith.constant 0.000000e+00 : f32
    %17 = vector.broadcast %cst_12 : f32 to vector<32x100xf32>
    %18 = arith.maximumf %16, %17 : vector<32x100xf32>
    %19 = tpu.iota {dimensions = array<i32: 0>} : vector<16x11xi32>
    %20 = tpu.iota {dimensions = array<i32: 1>} : vector<16x11xi32>
    %cst_13 = arith.constant 0.000000e+00 : f32
    %21 = vector.broadcast %cst_13 : f32 to vector<16x11xf32>
    %22 = arith.index_cast %arg0 : i32 to index
    %c0_14 = arith.constant 0 : index
    %23 = memref.load %arg1[%22, %c0_14] : memref<1x10xi32, #tpu.memory_space<smem>>
    %c0_i32 = arith.constant 0 : i32
    %24 = vector.broadcast %c0_i32 : i32 to vector<16x11xi32>
    %25 = arith.cmpi eq, %19, %24 : vector<16x11xi32>
    %26 = vector.broadcast %23 : i32 to vector<16x11xi32>
    %27 = arith.cmpi eq, %20, %26 : vector<16x11xi32>
    %28 = arith.andi %25, %27 : vector<16x11xi1>
    %cst_15 = arith.constant 1.000000e+00 : f32
    %29 = vector.broadcast %cst_15 : f32 to vector<16x11xf32>
    %30 = arith.select %28, %29, %21 : vector<16x11xi1>, vector<16x11xf32>
    %31 = arith.index_cast %arg0 : i32 to index
    %c1_16 = arith.constant 1 : index
    %32 = memref.load %arg1[%31, %c1_16] : memref<1x10xi32, #tpu.memory_space<smem>>
    %c1_i32 = arith.constant 1 : i32
    %33 = vector.broadcast %c1_i32 : i32 to vector<16x11xi32>
    %34 = arith.cmpi eq, %19, %33 : vector<16x11xi32>
    %35 = vector.broadcast %32 : i32 to vector<16x11xi32>
    %36 = arith.cmpi eq, %20, %35 : vector<16x11xi32>
    %37 = arith.andi %34, %36 : vector<16x11xi1>
    %cst_17 = arith.constant 1.000000e+00 : f32
    %38 = vector.broadcast %cst_17 : f32 to vector<16x11xf32>
    %39 = arith.select %37, %38, %30 : vector<16x11xi1>, vector<16x11xf32>
    %40 = arith.index_cast %arg0 : i32 to index
    %c2 = arith.constant 2 : index
    %41 = memref.load %arg1[%40, %c2] : memref<1x10xi32, #tpu.memory_space<smem>>
    %c2_i32 = arith.constant 2 : i32
    %42 = vector.broadcast %c2_i32 : i32 to vector<16x11xi32>
    %43 = arith.cmpi eq, %19, %42 : vector<16x11xi32>
    %44 = vector.broadcast %41 : i32 to vector<16x11xi32>
    %45 = arith.cmpi eq, %20, %44 : vector<16x11xi32>
    %46 = arith.andi %43, %45 : vector<16x11xi1>
    %cst_18 = arith.constant 1.000000e+00 : f32
    %47 = vector.broadcast %cst_18 : f32 to vector<16x11xf32>
    %48 = arith.select %46, %47, %39 : vector<16x11xi1>, vector<16x11xf32>
    %49 = arith.index_cast %arg0 : i32 to index
    %c3 = arith.constant 3 : index
    %50 = memref.load %arg1[%49, %c3] : memref<1x10xi32, #tpu.memory_space<smem>>
    %c3_i32 = arith.constant 3 : i32
    %51 = vector.broadcast %c3_i32 : i32 to vector<16x11xi32>
    %52 = arith.cmpi eq, %19, %51 : vector<16x11xi32>
    %53 = vector.broadcast %50 : i32 to vector<16x11xi32>
    %54 = arith.cmpi eq, %20, %53 : vector<16x11xi32>
    %55 = arith.andi %52, %54 : vector<16x11xi1>
    %cst_19 = arith.constant 1.000000e+00 : f32
    %56 = vector.broadcast %cst_19 : f32 to vector<16x11xf32>
    %57 = arith.select %55, %56, %48 : vector<16x11xi1>, vector<16x11xf32>
    %58 = arith.index_cast %arg0 : i32 to index
    %c4 = arith.constant 4 : index
    %59 = memref.load %arg1[%58, %c4] : memref<1x10xi32, #tpu.memory_space<smem>>
    %c4_i32 = arith.constant 4 : i32
    %60 = vector.broadcast %c4_i32 : i32 to vector<16x11xi32>
    %61 = arith.cmpi eq, %19, %60 : vector<16x11xi32>
    %62 = vector.broadcast %59 : i32 to vector<16x11xi32>
    %63 = arith.cmpi eq, %20, %62 : vector<16x11xi32>
    %64 = arith.andi %61, %63 : vector<16x11xi1>
    %cst_20 = arith.constant 1.000000e+00 : f32
    %65 = vector.broadcast %cst_20 : f32 to vector<16x11xf32>
    %66 = arith.select %64, %65, %57 : vector<16x11xi1>, vector<16x11xf32>
    %67 = arith.index_cast %arg0 : i32 to index
    %c5 = arith.constant 5 : index
    %68 = memref.load %arg1[%67, %c5] : memref<1x10xi32, #tpu.memory_space<smem>>
    %c5_i32 = arith.constant 5 : i32
    %69 = vector.broadcast %c5_i32 : i32 to vector<16x11xi32>
    %70 = arith.cmpi eq, %19, %69 : vector<16x11xi32>
    %71 = vector.broadcast %68 : i32 to vector<16x11xi32>
    %72 = arith.cmpi eq, %20, %71 : vector<16x11xi32>
    %73 = arith.andi %70, %72 : vector<16x11xi1>
    %cst_21 = arith.constant 1.000000e+00 : f32
    %74 = vector.broadcast %cst_21 : f32 to vector<16x11xf32>
    %75 = arith.select %73, %74, %66 : vector<16x11xi1>, vector<16x11xf32>
    %76 = arith.index_cast %arg0 : i32 to index
    %c6 = arith.constant 6 : index
    %77 = memref.load %arg1[%76, %c6] : memref<1x10xi32, #tpu.memory_space<smem>>
    %c6_i32 = arith.constant 6 : i32
    %78 = vector.broadcast %c6_i32 : i32 to vector<16x11xi32>
    %79 = arith.cmpi eq, %19, %78 : vector<16x11xi32>
    %80 = vector.broadcast %77 : i32 to vector<16x11xi32>
    %81 = arith.cmpi eq, %20, %80 : vector<16x11xi32>
    %82 = arith.andi %79, %81 : vector<16x11xi1>
    %cst_22 = arith.constant 1.000000e+00 : f32
    %83 = vector.broadcast %cst_22 : f32 to vector<16x11xf32>
    %84 = arith.select %82, %83, %75 : vector<16x11xi1>, vector<16x11xf32>
    %85 = arith.index_cast %arg0 : i32 to index
    %c7 = arith.constant 7 : index
    %86 = memref.load %arg1[%85, %c7] : memref<1x10xi32, #tpu.memory_space<smem>>
    %c7_i32 = arith.constant 7 : i32
    %87 = vector.broadcast %c7_i32 : i32 to vector<16x11xi32>
    %88 = arith.cmpi eq, %19, %87 : vector<16x11xi32>
    %89 = vector.broadcast %86 : i32 to vector<16x11xi32>
    %90 = arith.cmpi eq, %20, %89 : vector<16x11xi32>
    %91 = arith.andi %88, %90 : vector<16x11xi1>
    %cst_23 = arith.constant 1.000000e+00 : f32
    %92 = vector.broadcast %cst_23 : f32 to vector<16x11xf32>
    %93 = arith.select %91, %92, %84 : vector<16x11xi1>, vector<16x11xf32>
    %94 = arith.index_cast %arg0 : i32 to index
    %c8 = arith.constant 8 : index
    %95 = memref.load %arg1[%94, %c8] : memref<1x10xi32, #tpu.memory_space<smem>>
    %c8_i32 = arith.constant 8 : i32
    %96 = vector.broadcast %c8_i32 : i32 to vector<16x11xi32>
    %97 = arith.cmpi eq, %19, %96 : vector<16x11xi32>
    %98 = vector.broadcast %95 : i32 to vector<16x11xi32>
    %99 = arith.cmpi eq, %20, %98 : vector<16x11xi32>
    %100 = arith.andi %97, %99 : vector<16x11xi1>
    %cst_24 = arith.constant 1.000000e+00 : f32
    %101 = vector.broadcast %cst_24 : f32 to vector<16x11xf32>
    %102 = arith.select %100, %101, %93 : vector<16x11xi1>, vector<16x11xf32>
    %103 = arith.index_cast %arg0 : i32 to index
    %c9 = arith.constant 9 : index
    %104 = memref.load %arg1[%103, %c9] : memref<1x10xi32, #tpu.memory_space<smem>>
    %c9_i32 = arith.constant 9 : i32
    %105 = vector.broadcast %c9_i32 : i32 to vector<16x11xi32>
    %106 = arith.cmpi eq, %19, %105 : vector<16x11xi32>
    %107 = vector.broadcast %104 : i32 to vector<16x11xi32>
    %108 = arith.cmpi eq, %20, %107 : vector<16x11xi32>
    %109 = arith.andi %106, %108 : vector<16x11xi1>
    %cst_25 = arith.constant 1.000000e+00 : f32
    %110 = vector.broadcast %cst_25 : f32 to vector<16x11xf32>
    %111 = arith.select %109, %110, %102 : vector<16x11xi1>, vector<16x11xf32>
    %c0_26 = arith.constant 0 : index
    %c0_27 = arith.constant 0 : index
    %112 = vector.load %arg5[%c0_26, %c0_27] : memref<11x32xf32, #tpu.memory_space<vmem>>, vector<11x32xf32>
    %cst_28 = arith.constant dense<0.000000e+00> : vector<16x32xf32>
    %113 = tpu.matmul %111, %112, %cst_28 {dimension_numbers = #tpu.dot_dimension_numbers<[1], [0], [0], [1], [0, 0, 1, 1], [], []>} : vector<16x11xf32>, vector<11x32xf32>, vector<16x32xf32> -> vector<16x32xf32>
    %114 = arith.truncf %113 : vector<16x32xf32> to vector<16x32xbf16>
    %115 = arith.truncf %10 : vector<32x100xf32> to vector<32x100xbf16>
    %cst_29 = arith.constant dense<0.000000e+00> : vector<16x100xf32>
    %116 = tpu.matmul %114, %115, %cst_29 {dimension_numbers = #tpu.dot_dimension_numbers<[1], [0], [0], [1], [0, 0, 1, 1], [], []>} : vector<16x32xbf16>, vector<32x100xbf16>, vector<16x100xf32> -> vector<16x100xf32>
    %117 = arith.truncf %18 : vector<32x100xf32> to vector<32x100xbf16>
    %cst_30 = arith.constant dense<0.000000e+00> : vector<16x100xf32>
    %118 = tpu.matmul %114, %117, %cst_30 {dimension_numbers = #tpu.dot_dimension_numbers<[1], [0], [0], [1], [0, 0, 1, 1], [], []>} : vector<16x32xbf16>, vector<32x100xbf16>, vector<16x100xf32> -> vector<16x100xf32>
    %cst_31 = arith.constant 0.0883883461 : f32
    %119 = vector.broadcast %cst_31 : f32 to vector<16x100xf32>
    %120 = arith.mulf %119, %116 : vector<16x100xf32>
    %121 = math.tanh %120 : vector<16x100xf32>
    %cst_32 = arith.constant 5.000000e-01 : f32
    %122 = vector.broadcast %cst_32 : f32 to vector<16x100xf32>
    %123 = arith.mulf %122, %121 : vector<16x100xf32>
    %cst_33 = arith.constant 5.000000e-01 : f32
    %124 = vector.broadcast %cst_33 : f32 to vector<16x100xf32>
    %125 = arith.addf %123, %124 : vector<16x100xf32>
    %c0_34 = arith.constant 0 : index
    %c0_35 = arith.constant 0 : index
    %c0_36 = arith.constant 0 : index
    %c0_37 = arith.constant 0 : index
    %126 = vector.load %arg6[%c0_34, %c0_35, %c0_36, %c0_37] : memref<1x2x16x100xf32, #tpu.memory_space<vmem>>, vector<1x1x16x100xf32>
    %127 = vector.shape_cast %126 : vector<1x1x16x100xf32> to vector<16x100xf32>
    %128 = vector.shape_cast %125 : vector<16x100xf32> to vector<1x1x16x100xf32>
    tpu.vector_store %arg6[%c0_34, %c0_35, %c0_36, %c0_37], %128 {strides = array<i32>} : memref<1x2x16x100xf32, #tpu.memory_space<vmem>>, vector<1x1x16x100xf32>,
    %cst_38 = arith.constant 0.0883883461 : f32
    %129 = vector.broadcast %cst_38 : f32 to vector<16x100xf32>
    %130 = arith.mulf %129, %118 : vector<16x100xf32>
    %131 = math.tanh %130 : vector<16x100xf32>
    %cst_39 = arith.constant 5.000000e-01 : f32
    %132 = vector.broadcast %cst_39 : f32 to vector<16x100xf32>
    %133 = arith.mulf %132, %131 : vector<16x100xf32>
    %cst_40 = arith.constant 5.000000e-01 : f32
    %134 = vector.broadcast %cst_40 : f32 to vector<16x100xf32>
    %135 = arith.addf %133, %134 : vector<16x100xf32>
    %c0_41 = arith.constant 0 : index
    %c1_42 = arith.constant 1 : index
    %c0_43 = arith.constant 0 : index
    %c0_44 = arith.constant 0 : index
    %136 = vector.load %arg6[%c0_41, %c1_42, %c0_43, %c0_44] : memref<1x2x16x100xf32, #tpu.memory_space<vmem>>, vector<1x1x16x100xf32>
    %137 = vector.shape_cast %136 : vector<1x1x16x100xf32> to vector<16x100xf32>
    %138 = vector.shape_cast %135 : vector<16x100xf32> to vector<1x1x16x100xf32>
    tpu.vector_store %arg6[%c0_41, %c1_42, %c0_43, %c0_44], %138 {strides = array<i32>} : memref<1x2x16x100xf32, #tpu.memory_space<vmem>>, vector<1x1x16x100xf32>,
    return
  }
  func.func @transform_0(%arg0: i32, %arg1: memref<1x10xi32, #tpu.memory_space<smem>>) -> (i32, i32, i32, i32) {
    %c0_i32 = arith.constant 0 : i32
    %c0_i32_0 = arith.constant 0 : i32
    %c0_i32_1 = arith.constant 0 : i32
    %c0_i32_2 = arith.constant 0 : i32
    return %arg0, %c0_i32, %c0_i32_0, %c0_i32_1 : i32, i32, i32, i32
  }
  func.func @transform_1(%arg0: i32, %arg1: memref<1x10xi32, #tpu.memory_space<smem>>) -> (i32, i32) {
    %c0_i32 = arith.constant 0 : i32
    %c0_i32_0 = arith.constant 0 : i32
    %c0_i32_1 = arith.constant 0 : i32
    return %c0_i32, %c0_i32_0 : i32, i32
  }
  func.func @transform_2(%arg0: i32, %arg1: memref<1x10xi32, #tpu.memory_space<smem>>) -> (i32, i32) {
    %c0_i32 = arith.constant 0 : i32
    %c0_i32_0 = arith.constant 0 : i32
    %c0_i32_1 = arith.constant 0 : i32
    return %c0_i32, %c0_i32_0 : i32, i32
  }
  func.func @transform_3(%arg0: i32, %arg1: memref<1x10xi32, #tpu.memory_space<smem>>) -> (i32, i32) {
    %c0_i32 = arith.constant 0 : i32
    %c0_i32_0 = arith.constant 0 : i32
    %c0_i32_1 = arith.constant 0 : i32
    return %c0_i32, %c0_i32_0 : i32, i32
  }
  func.func @transform_4(%arg0: i32, %arg1: memref<1x10xi32, #tpu.memory_space<smem>>) -> (i32, i32, i32, i32) {
    %c0_i32 = arith.constant 0 : i32
    %c0_i32_0 = arith.constant 0 : i32
    %c0_i32_1 = arith.constant 0 : i32
    %c0_i32_2 = arith.constant 0 : i32
    return %arg0, %c0_i32, %c0_i32_0, %c0_i32_1 : i32, i32, i32, i32
  }
}

</mosaic_0001>

<llo_original>
// kernel: dvsa_forward.1
$region0: #{dvsa_forward.1}
  #allocation0 [shape = 'u32[]', space=smem, size = 0x4, offset = 0x4, fixed_abs, tag = 'smem constant byte address 0x4 - core index']
  #allocation1 [shape = 'u32[144,128]{1,0:T(1,128)}', space=vmem, size = 0x12000, scoped, tag = 'internal scratch']
  #allocation2 [shape = 's32[1]{0}', space=sflag, size = 0x4, scoped, tag = 'scoped memory for dvsa_forward.1']
  #allocation3 [shape = 'u8[512]{0}', space=smem, size = 0x200, scoped, tag = 'prefetched SMEM operand 0']
  %s0 = inlined_call_operand.vmem [shape: s32[1,10], index: 0, kind: input, shape index: {}]
  %s1 = inlined_call_operand.vmem [shape: f32[1,2,32,100], index: 1, kind: input, shape index: {}]
  %s2 = inlined_call_operand.vmem [shape: f32[32,32], index: 2, kind: input, shape index: {}]
  %s3 = inlined_call_operand.vmem [shape: f32[32,1], index: 3, kind: input, shape index: {}]
  %s4 = inlined_call_operand.vmem [shape: f32[11,32], index: 4, kind: input, shape index: {}]
  %s5 = inlined_call_operand.vmem [shape: f32[1,2,16,100], index: 5, kind: output, shape index: {}]
  %s6 = sld [smem:[#allocation0]]
  $region26: #{dvsa_forward.1} parent=0
    _
  %s8 = ssub.s32 1, %s6
  %s9 = scalar_select 0, %s8, %s6
  %s10 = sshll.u32 %s0, 4
  %s11 = int_to_ptr.vmem [resolvable:$true] %s10
  %13 = dma.vmem_to_smem %s11, 16, [#allocation3], [#allocation2]
  %14 = dma.done [#allocation2], 16
  %15 = sfence
  // Predicated region
  $region2: #{dvsa_forward.1} parent=0 // pred_check
    _
  $region3: #{dvsa_forward.1} parent=0 // pred_check_branch
    %17 = sbr.rel (0) target = $region5
  $region4: #{dvsa_forward.1} parent=0 // pred_region
    _
  $region5: #{dvsa_forward.1} parent=0 // pred_fallthru
    _
  // Predicated region
  $region6: #{dvsa_forward.1} parent=0 // pred_check
    _
  $region7: #{dvsa_forward.1} parent=0 // pred_check_branch
    %19 = sbr.rel (0) target = $region9
  $region8: #{dvsa_forward.1} parent=0 // pred_region
    _
  $region9: #{dvsa_forward.1} parent=0 // pred_fallthru
    _
  // Predicated region
  $region10: #{dvsa_forward.1} parent=0 // pred_check
    _
  $region11: #{dvsa_forward.1} parent=0 // pred_check_branch
    %21 = sbr.rel (0) target = $region13
  $region12: #{dvsa_forward.1} parent=0 // pred_region
    _
  $region13: #{dvsa_forward.1} parent=0 // pred_fallthru
    _
  // Predicated region
  $region14: #{dvsa_forward.1} parent=0 // pred_check
    _
  $region15: #{dvsa_forward.1} parent=0 // pred_check_branch
    %23 = sbr.rel (0) target = $region17
  $region16: #{dvsa_forward.1} parent=0 // pred_region
    _
  $region17: #{dvsa_forward.1} parent=0 // pred_fallthru
    _
  %v25 = vld [vmem:[%s2] sm:$0xff]
  %v26 = vld [vmem:[%s2 + $0x8] sm:$0xff]
  %v27 = vld [vmem:[%s2 + $0x10] sm:$0xff]
  %v28 = vld [vmem:[%s2 + $0x18] sm:$0xff]
  %v29 = vpack.c.bf16 %v26, %v25
  %v30 = vpack.c.bf16 %v28, %v27
  %v31 = vld [vmem:[%s3] sm:$0xff]
  %v32 = vld [vmem:[%s3 + $0x8] sm:$0xff]
  %v33 = vld [vmem:[%s3 + $0x10] sm:$0xff]
  %v34 = vld [vmem:[%s3 + $0x18] sm:$0xff]
  %v35 = vld [vmem:[%s1] sm:$0xff]
  %v36 = vld [vmem:[%s1 + $0x8] sm:$0xff]
  %v37 = vld [vmem:[%s1 + $0x10] sm:$0xff]
  %v38 = vld [vmem:[%s1 + $0x18] sm:$0xff]
  %v39 = vpack.c.bf16 %v36, %v35
  %v40 = vpack.c.bf16 %v38, %v37
  %42 = vset.pattern.permute.xlu0 0
  %43 = vperm.xlu0 %42, %v31
  %v44 = vpop.permute.xlu0 %43
  %47 = vset.pattern.permute.xlu0 0
  %48 = vperm.xlu0 %47, %v32
  %v49 = vpop.permute.xlu0 %48
  %52 = vset.pattern.permute.xlu0 0
  %53 = vperm.xlu0 %52, %v33
  %v54 = vpop.permute.xlu0 %53
  %57 = vset.pattern.permute.xlu0 0
  %58 = vperm.xlu0 %57, %v34
  %v59 = vpop.permute.xlu0 %58
  %vm61 = vcmask 261120
  %v63 = vsel %vm61, %v29, 0
  %v66 = vsel %vm61, %v30, 0
  %68 = vmatprep.subr.bf16.mxu0 0
  %69 = vmatpush1.bf16.msra.mxu0 %v39
  %70 = vmatprep.subr.bf16.mxu0 0
  %71 = vmatpush1.bf16.msra.mxu0 %v40
  %72 = vmatprep.subr.bf16.mxu0 0
  %73 = vmatpush1.bf16.msra.mxu0 0
  %74 = vmatprep.subr.bf16.mxu0 0
  %75 = vmatpush1.bf16.msra.mxu0 0
  %76 = vmatprep.subr.bf16.mxu0 0
  %77 = vmatpush1.bf16.msra.mxu0 0
  %78 = vmatprep.subr.bf16.mxu0 0
  %79 = vmatpush1.bf16.msra.mxu0 0
  %80 = vmatprep.subr.bf16.mxu0 0
  %81 = vmatpush1.bf16.msra.mxu0 0
  %82 = vmatprep.subr.bf16.mxu0 0
  %83 = vmatpush1.bf16.msra.mxu0 0
  %84 = vmatprep.subr.bf16.mxu0 0
  %85 = vmatpush1.bf16.msra.mxu0 0
  %86 = vmatprep.subr.bf16.mxu0 0
  %87 = vmatpush1.bf16.msra.mxu0 0
  %88 = vmatprep.subr.bf16.mxu0 0
  %89 = vmatpush1.bf16.msra.mxu0 0
  %90 = vmatprep.subr.bf16.mxu0 0
  %91 = vmatpush1.bf16.msra.mxu0 0
  %92 = vmatprep.subr.bf16.mxu0 0
  %93 = vmatpush1.bf16.msra.mxu0 0
  %94 = vmatprep.subr.bf16.mxu0 0
  %95 = vmatpush1.bf16.msra.mxu0 0
  %96 = vmatprep.subr.bf16.mxu0 0
  %97 = vmatpush1.bf16.msra.mxu0 0
  %98 = vmatprep.subr.bf16.mxu0 0
  %99 = vmatpush1.bf16.msra.mxu0 0
  %100 = vmatprep.mubr.bf16.mxu0 0
  %101 = vmatmul.mubr.bf16.gmra.mrb[0].mxu0 %v63
  %v102 = vpop.f32.mrb[0].mxu0
  %v103 = vadd.f32 %v44, %v102
  %v104 = vpop.f32.mrb[0].mxu0
  %v105 = vpop.f32.mrb[0].mxu0
  %v106 = vadd.f32 %v49, %v105
  %v107 = vpop.f32.mrb[0].mxu0
  %108 = vmatprep.mubr.bf16.mxu0 0
  %109 = vmatmul.mubr.bf16.gmra.mrb[0].mxu0 %v66
  %v110 = vpop.f32.mrb[0].mxu0
  %v111 = vadd.f32 %v54, %v110
  %v112 = vpop.f32.mrb[0].mxu0
  %v113 = vpop.f32.mrb[0].mxu0
  %v114 = vadd.f32 %v59, %v113
  %v115 = vpop.f32.mrb[0].mxu0
  %116 = vdwg.mxu0
  %v117 = vmax.f32 %v103, 0.0
  %v118 = vmax.f32 %v106, 0.0
  %v119 = vmax.f32 %v111, 0.0
  %v120 = vmax.f32 %v114, 0.0
  %s121 = scalar_lea.vmem %s1, 32
  %v122 = vld [vmem:[%s121] sm:$0xff]
  %v123 = vld [vmem:[%s121 + $0x8] sm:$0xff]
  %v124 = vld [vmem:[%s121 + $0x10] sm:$0xff]
  %v125 = vld [vmem:[%s121 + $0x18] sm:$0xff]
  %v126 = vpack.c.bf16 %v123, %v122
  %v127 = vpack.c.bf16 %v125, %v124
  %128 = vmatprep.subr.bf16.mxu0 0
  %129 = vmatpush1.bf16.msra.mxu0 %v126
  %130 = vmatprep.subr.bf16.mxu0 0
  %131 = vmatpush1.bf16.msra.mxu0 %v127
  %132 = vmatprep.subr.bf16.mxu0 0
  %133 = vmatpush1.bf16.msra.mxu0 0
  %134 = vmatprep.subr.bf16.mxu0 0
  %135 = vmatpush1.bf16.msra.mxu0 0
  %136 = vmatprep.subr.bf16.mxu0 0
  %137 = vmatpush1.bf16.msra.mxu0 0
  %138 = vmatprep.subr.bf16.mxu0 0
  %139 = vmatpush1.bf16.msra.mxu0 0
  %140 = vmatprep.subr.bf16.mxu0 0
  %141 = vmatpush1.bf16.msra.mxu0 0
  %142 = vmatprep.subr.bf16.mxu0 0
  %143 = vmatpush1.bf16.msra.mxu0 0
  %144 = vmatprep.subr.bf16.mxu0 0
  %145 = vmatpush1.bf16.msra.mxu0 0
  %146 = vmatprep.subr.bf16.mxu0 0
  %147 = vmatpush1.bf16.msra.mxu0 0
  %148 = vmatprep.subr.bf16.mxu0 0
  %149 = vmatpush1.bf16.msra.mxu0 0
  %150 = vmatprep.subr.bf16.mxu0 0
  %151 = vmatpush1.bf16.msra.mxu0 0
  %152 = vmatprep.subr.bf16.mxu0 0
  %153 = vmatpush1.bf16.msra.mxu0 0
  %154 = vmatprep.subr.bf16.mxu0 0
  %155 = vmatpush1.bf16.msra.mxu0 0
  %156 = vmatprep.subr.bf16.mxu0 0
  %157 = vmatpush1.bf16.msra.mxu0 0
  %158 = vmatprep.subr.bf16.mxu0 0
  %159 = vmatpush1.bf16.msra.mxu0 0
  %160 = vmatprep.mubr.bf16.mxu0 0
  %161 = vmatmul.mubr.bf16.gmra.mrb[0].mxu0 %v63
  %v162 = vpop.f32.mrb[0].mxu0
  %v163 = vadd.f32 %v44, %v162
  %v164 = vpop.f32.mrb[0].mxu0
  %v165 = vpop.f32.mrb[0].mxu0
  %v166 = vadd.f32 %v49, %v165
  %v167 = vpop.f32.mrb[0].mxu0
  %168 = vmatprep.mubr.bf16.mxu0 0
  %169 = vmatmul.mubr.bf16.gmra.mrb[0].mxu0 %v66
  %v170 = vpop.f32.mrb[0].mxu0
  %v171 = vadd.f32 %v54, %v170
  %v172 = vpop.f32.mrb[0].mxu0
  %v173 = vpop.f32.mrb[0].mxu0
  %v174 = vadd.f32 %v59, %v173
  %v175 = vpop.f32.mrb[0].mxu0
  %176 = vdwg.mxu0
  %v177 = vmax.f32 %v163, 0.0
  %v178 = vmax.f32 %v166, 0.0
  %v179 = vmax.f32 %v171, 0.0
  %v180 = vmax.f32 %v174, 0.0
  %v181 = vlaneseq
  %v182 = vshrl.u32 %v181, 7
  %v183 = vadd.s32 %v182, 8
  %v184 = vlaneseq
  %v185 = vand.u32 %v184, 127
  %s186 = smul.u32 0, 128
  %s187 = sld [smem:[#allocation3 + %s186]]
  %vm188 = vcmp.eq.s32.totalorder %v182, 0
  %vm189 = vcmp.eq.s32.totalorder %v183, 0
  %v190 = vstv %s187
  %vm191 = vcmp.eq.s32.totalorder %v185, %v190
  %vm192 = vmand %vm188, %vm191
  %vm193 = vmand %vm189, %vm191
  %v194 = vsel %vm192, 1.0, 0.0
  %v195 = vsel %vm193, 1.0, 0.0
  %s196 = sadd.s32 %s186, 1
  %s197 = sld [smem:[#allocation3 + %s196]]
  %vm198 = vcmp.eq.s32.totalorder %v182, 1
  %vm199 = vcmp.eq.s32.totalorder %v183, 1
  %v200 = vstv %s197
  %vm201 = vcmp.eq.s32.totalorder %v185, %v200
  %vm202 = vmand %vm198, %vm201
  %vm203 = vmand %vm199, %vm201
  %v204 = vsel %vm202, 1.0, %v194
  %v205 = vsel %vm203, 1.0, %v195
  %s206 = sadd.s32 %s186, 2
  %s207 = sld [smem:[#allocation3 + %s206]]
  %vm208 = vcmp.eq.s32.totalorder %v182, 2
  %vm209 = vcmp.eq.s32.totalorder %v183, 2
  %v210 = vstv %s207
  %vm211 = vcmp.eq.s32.totalorder %v185, %v210
  %vm212 = vmand %vm208, %vm211
  %vm213 = vmand %vm209, %vm211
  %v214 = vsel %vm212, 1.0, %v204
  %v215 = vsel %vm213, 1.0, %v205
  %s216 = sadd.s32 %s186, 3
  %s217 = sld [smem:[#allocation3 + %s216]]
  %vm218 = vcmp.eq.s32.totalorder %v182, 3
  %vm219 = vcmp.eq.s32.totalorder %v183, 3
  %v220 = vstv %s217
  %vm221 = vcmp.eq.s32.totalorder %v185, %v220
  %vm222 = vmand %vm218, %vm221
  %vm223 = vmand %vm219, %vm221
  %v224 = vsel %vm222, 1.0, %v214
  %v225 = vsel %vm223, 1.0, %v215
  %s226 = sadd.s32 %s186, 4
  %s227 = sld [smem:[#allocation3 + %s226]]
  %vm228 = vcmp.eq.s32.totalorder %v182, 4
  %vm229 = vcmp.eq.s32.totalorder %v183, 4
  %v230 = vstv %s227
  %vm231 = vcmp.eq.s32.totalorder %v185, %v230
  %vm232 = vmand %vm228, %vm231
  %vm233 = vmand %vm229, %vm231
  %v234 = vsel %vm232, 1.0, %v224
  %v235 = vsel %vm233, 1.0, %v225
  %s236 = sadd.s32 %s186, 5
  %s237 = sld [smem:[#allocation3 + %s236]]
  %vm238 = vcmp.eq.s32.totalorder %v182, 5
  %vm239 = vcmp.eq.s32.totalorder %v183, 5
  %v240 = vstv %s237
  %vm241 = vcmp.eq.s32.totalorder %v185, %v240
  %vm242 = vmand %vm238, %vm241
  %vm243 = vmand %vm239, %vm241
  %v244 = vsel %vm242, 1.0, %v234
  %v245 = vsel %vm243, 1.0, %v235
  %s246 = sadd.s32 %s186, 6
  %s247 = sld [smem:[#allocation3 + %s246]]
  %vm248 = vcmp.eq.s32.totalorder %v182, 6
  %vm249 = vcmp.eq.s32.totalorder %v183, 6
  %v250 = vstv %s247
  %vm251 = vcmp.eq.s32.totalorder %v185, %v250
  %vm252 = vmand %vm248, %vm251
  %vm253 = vmand %vm249, %vm251
  %v254 = vsel %vm252, 1.0, %v244
  %v255 = vsel %vm253, 1.0, %v245
  %s256 = sadd.s32 %s186, 7
  %s257 = sld [smem:[#allocation3 + %s256]]
  %vm258 = vcmp.eq.s32.totalorder %v182, 7
  %vm259 = vcmp.eq.s32.totalorder %v183, 7
  %v260 = vstv %s257
  %vm261 = vcmp.eq.s32.totalorder %v185, %v260
  %vm262 = vmand %vm258, %vm261
  %vm263 = vmand %vm259, %vm261
  %v264 = vsel %vm262, 1.0, %v254
  %v265 = vsel %vm263, 1.0, %v255
  %s266 = sadd.s32 %s186, 8
  %s267 = sld [smem:[#allocation3 + %s266]]
  %vm268 = vcmp.eq.s32.totalorder %v182, 8
  %vm269 = vcmp.eq.s32.totalorder %v183, 8
  %v270 = vstv %s267
  %vm271 = vcmp.eq.s32.totalorder %v185, %v270
  %vm272 = vmand %vm268, %vm271
  %vm273 = vmand %vm269, %vm271
  %v274 = vsel %vm272, 1.0, %v264
  %v275 = vsel %vm273, 1.0, %v265
  %s276 = sadd.s32 %s186, 9
  %s277 = sld [smem:[#allocation3 + %s276]]
  %vm278 = vcmp.eq.s32.totalorder %v182, 9
  %vm279 = vcmp.eq.s32.totalorder %v183, 9
  %v280 = vstv %s277
  %vm281 = vcmp.eq.s32.totalorder %v185, %v280
  %vm282 = vmand %vm278, %vm281
  %vm283 = vmand %vm279, %vm281
  %v284 = vsel %vm282, 1.0, %v274
  %v285 = vsel %vm283, 1.0, %v275
  %v286 = vld [vmem:[%s4] sm:$0xff]
  %v287 = vld [vmem:[%s4 + $0x8] sm:$0x7]
  %vm288 = vcmask 89088
  %v290 = vsel %vm288, %v284, 0
  %v293 = vsel %vm288, %v285, 0
  %vm295 = vcmask 1042432
  %v297 = vsel %vm295, %v287, 0
  %299 = vmatprep.subr.mxu0 0.0
  %300 = vmatpush1.msra.mxu0 %v286
  %301 = vmatprep.subr.mxu0 0.0
  %302 = vmatpush1.msra.mxu0 %v297
  %303 = vmatprep.subr.mxu0 0.0
  %304 = vmatpush1.msra.mxu0 0.0
  %305 = vmatprep.subr.mxu0 0.0
  %306 = vmatpush1.msra.mxu0 0.0
  %307 = vmatprep.subr.mxu0 0.0
  %308 = vmatpush1.msra.mxu0 0.0
  %309 = vmatprep.subr.mxu0 0.0
  %310 = vmatpush1.msra.mxu0 0.0
  %311 = vmatprep.subr.mxu0 0.0
  %312 = vmatpush1.msra.mxu0 0.0
  %313 = vmatprep.subr.mxu0 0.0
  %314 = vmatpush1.msra.mxu0 0.0
  %315 = vmatprep.subr.mxu0 0.0
  %316 = vmatpush1.msra.mxu0 0.0
  %317 = vmatprep.subr.mxu0 0.0
  %318 = vmatpush1.msra.mxu0 0.0
  %319 = vmatprep.subr.mxu0 0.0
  %320 = vmatpush1.msra.mxu0 0.0
  %321 = vmatprep.subr.mxu0 0.0
  %322 = vmatpush1.msra.mxu0 0.0
  %323 = vmatprep.subr.mxu0 0.0
  %324 = vmatpush1.msra.mxu0 0.0
  %325 = vmatprep.subr.mxu0 0.0
  %326 = vmatpush1.msra.mxu0 0.0
  %327 = vmatprep.subr.mxu0 0.0
  %328 = vmatpush1.msra.mxu0 0.0
  %329 = vmatprep.subr.mxu0 0.0
  %330 = vmatpush1.msra.mxu0 0.0
  %331 = vmatprep.subr.mxu0 0.0
  %332 = vmatpush1.msra.mxu0 0.0
  %333 = vmatprep.subr.mxu0 0.0
  %334 = vmatpush1.msra.mxu0 0.0
  %335 = vmatprep.subr.mxu0 0.0
  %336 = vmatpush1.msra.mxu0 0.0
  %337 = vmatprep.subr.mxu0 0.0
  %338 = vmatpush1.msra.mxu0 0.0
  %339 = vmatprep.subr.mxu0 0.0
  %340 = vmatpush1.msra.mxu0 0.0
  %341 = vmatprep.subr.mxu0 0.0
  %342 = vmatpush1.msra.mxu0 0.0
  %343 = vmatprep.subr.mxu0 0.0
  %344 = vmatpush1.msra.mxu0 0.0
  %345 = vmatprep.subr.mxu0 0.0
  %346 = vmatpush1.msra.mxu0 0.0
  %347 = vmatprep.subr.mxu0 0.0
  %348 = vmatpush1.msra.mxu0 0.0
  %349 = vmatprep.subr.mxu0 0.0
  %350 = vmatpush1.msra.mxu0 0.0
  %351 = vmatprep.subr.mxu0 0.0
  %352 = vmatpush1.msra.mxu0 0.0
  %353 = vmatprep.subr.mxu0 0.0
  %354 = vmatpush1.msra.mxu0 0.0
  %355 = vmatprep.subr.mxu0 0.0
  %356 = vmatpush1.msra.mxu0 0.0
  %357 = vmatprep.subr.mxu0 0.0
  %358 = vmatpush1.msra.mxu0 0.0
  %359 = vmatprep.subr.mxu0 0.0
  %360 = vmatpush1.msra.mxu0 0.0
  %361 = vmatprep.subr.mxu0 0.0
  %362 = vmatpush1.msra.mxu0 0.0
  %363 = vmatprep.mubr.f32.mxu0 0.0
  %364 = vmatmul.mubr.f32.gmra.mrb[0].mxu0 %v290
  %v365 = vpop.f32.mrb[0].mxu0
  %v366 = vadd.f32 0.0, %v365
  %v367 = vpop.f32.mrb[0].mxu0
  %368 = vmatprep.mubr.f32.mxu0 0.0
  %369 = vmatmul.mubr.f32.gmra.mrb[0].mxu0 %v293
  %v370 = vpop.f32.mrb[0].mxu0
  %v371 = vadd.f32 0.0, %v370
  %v372 = vpop.f32.mrb[0].mxu0
  %373 = vdwg.mxu0
  %v374 = vpack.c.bf16 %v371, %v366
  %v375 = vpack.c.bf16 %v118, %v117
  %v376 = vpack.c.bf16 %v120, %v119
  %v378 = vsel %vm61, %v374, 0
  %380 = vmatprep.subr.bf16.mxu0 0
  %381 = vmatpush1.bf16.msra.mxu0 %v375
  %382 = vmatprep.subr.bf16.mxu0 0
  %383 = vmatpush1.bf16.msra.mxu0 %v376
  %384 = vmatprep.subr.bf16.mxu0 0
  %385 = vmatpush1.bf16.msra.mxu0 0
  %386 = vmatprep.subr.bf16.mxu0 0
  %387 = vmatpush1.bf16.msra.mxu0 0
  %388 = vmatprep.subr.bf16.mxu0 0
  %389 = vmatpush1.bf16.msra.mxu0 0
  %390 = vmatprep.subr.bf16.mxu0 0
  %391 = vmatpush1.bf16.msra.mxu0 0
  %392 = vmatprep.subr.bf16.mxu0 0
  %393 = vmatpush1.bf16.msra.mxu0 0
  %394 = vmatprep.subr.bf16.mxu0 0
  %395 = vmatpush1.bf16.msra.mxu0 0
  %396 = vmatprep.subr.bf16.mxu0 0
  %397 = vmatpush1.bf16.msra.mxu0 0
  %398 = vmatprep.subr.bf16.mxu0 0
  %399 = vmatpush1.bf16.msra.mxu0 0
  %400 = vmatprep.subr.bf16.mxu0 0
  %401 = vmatpush1.bf16.msra.mxu0 0
  %402 = vmatprep.subr.bf16.mxu0 0
  %403 = vmatpush1.bf16.msra.mxu0 0
  %404 = vmatprep.subr.bf16.mxu0 0
  %405 = vmatpush1.bf16.msra.mxu0 0
  %406 = vmatprep.subr.bf16.mxu0 0
  %407 = vmatpush1.bf16.msra.mxu0 0
  %408 = vmatprep.subr.bf16.mxu0 0
  %409 = vmatpush1.bf16.msra.mxu0 0
  %410 = vmatprep.subr.bf16.mxu0 0
  %411 = vmatpush1.bf16.msra.mxu0 0
  %412 = vmatprep.mubr.bf16.mxu0 0
  %413 = vmatmul.mubr.bf16.gmra.mrb[0].mxu0 %v378
  %v414 = vpop.f32.mrb[0].mxu0
  %v415 = vadd.f32 0.0, %v414
  %v416 = vpop.f32.mrb[0].mxu0
  %v417 = vpop.f32.mrb[0].mxu0
  %v418 = vadd.f32 0.0, %v417
  %v419 = vpop.f32.mrb[0].mxu0
  %420 = vdwg.mxu0
  %v421 = vpack.c.bf16 %v178, %v177
  %v422 = vpack.c.bf16 %v180, %v179
  %423 = vmatprep.subr.bf16.mxu0 0
  %424 = vmatpush1.bf16.msra.mxu0 %v421
  %425 = vmatprep.subr.bf16.mxu0 0
  %426 = vmatpush1.bf16.msra.mxu0 %v422
  %427 = vmatprep.subr.bf16.mxu0 0
  %428 = vmatpush1.bf16.msra.mxu0 0
  %429 = vmatprep.subr.bf16.mxu0 0
  %430 = vmatpush1.bf16.msra.mxu0 0
  %431 = vmatprep.subr.bf16.mxu0 0
  %432 = vmatpush1.bf16.msra.mxu0 0
  %433 = vmatprep.subr.bf16.mxu0 0
  %434 = vmatpush1.bf16.msra.mxu0 0
  %435 = vmatprep.subr.bf16.mxu0 0
  %436 = vmatpush1.bf16.msra.mxu0 0
  %437 = vmatprep.subr.bf16.mxu0 0
  %438 = vmatpush1.bf16.msra.mxu0 0
  %439 = vmatprep.subr.bf16.mxu0 0
  %440 = vmatpush1.bf16.msra.mxu0 0
  %441 = vmatprep.subr.bf16.mxu0 0
  %442 = vmatpush1.bf16.msra.mxu0 0
  %443 = vmatprep.subr.bf16.mxu0 0
  %444 = vmatpush1.bf16.msra.mxu0 0
  %445 = vmatprep.subr.bf16.mxu0 0
  %446 = vmatpush1.bf16.msra.mxu0 0
  %447 = vmatprep.subr.bf16.mxu0 0
  %448 = vmatpush1.bf16.msra.mxu0 0
  %449 = vmatprep.subr.bf16.mxu0 0
  %450 = vmatpush1.bf16.msra.mxu0 0
  %451 = vmatprep.subr.bf16.mxu0 0
  %452 = vmatpush1.bf16.msra.mxu0 0
  %453 = vmatprep.subr.bf16.mxu0 0
  %454 = vmatpush1.bf16.msra.mxu0 0
  %455 = vmatprep.mubr.bf16.mxu0 0
  %456 = vmatmul.mubr.bf16.gmra.mrb[0].mxu0 %v378
  %v457 = vpop.f32.mrb[0].mxu0
  %v458 = vadd.f32 0.0, %v457
  %v459 = vpop.f32.mrb[0].mxu0
  %v460 = vpop.f32.mrb[0].mxu0
  %v461 = vadd.f32 0.0, %v460
  %v462 = vpop.f32.mrb[0].mxu0
  %463 = vdwg.mxu0
  %v464 = vmul.f32 %v415, 0.088388346
  %v465 = vmul.f32 %v418, 0.088388346
  %v466 = vtanh.pop %v464
  %v467 = vtanh.pop %v465
  %v468 = vmul.f32 %v466, 0.5
  %v469 = vmul.f32 %v467, 0.5
  %v470 = vadd.f32 %v468, 0.5
  %v471 = vadd.f32 %v469, 0.5
  %vm472 = vcmask 818176
  %473 = vst.msk [vmem:[%s5] sm:$0xff] %vm472, %v470
  %474 = vst.msk [vmem:[%s5 + $0x8] sm:$0xff] %vm472, %v471
  %v475 = vmul.f32 %v458, 0.088388346
  %v476 = vmul.f32 %v461, 0.088388346
  %v477 = vtanh.pop %v475
  %v478 = vtanh.pop %v476
  %v479 = vmul.f32 %v477, 0.5
  %v480 = vmul.f32 %v478, 0.5
  %v481 = vadd.f32 %v479, 0.5
  %v482 = vadd.f32 %v480, 0.5
  %s483 = scalar_lea.vmem %s5, 16
  %484 = vst.msk [vmem:[%s483] sm:$0xff] %vm472, %v481
  %485 = vst.msk [vmem:[%s483 + $0x8] sm:$0xff] %vm472, %v482
  // Predicated region
  $region18: #{dvsa_forward.1} parent=0 // pred_check
    _
  $region19: #{dvsa_forward.1} parent=0 // pred_check_branch
    %487 = sbr.rel (0) target = $region21
  $region20: #{dvsa_forward.1} parent=0 // pred_region
    _
  $region21: #{dvsa_forward.1} parent=0 // pred_fallthru
    _
  // Predicated region
  $region22: #{dvsa_forward.1} parent=0 // pred_check
    _
  $region23: #{dvsa_forward.1} parent=0 // pred_check_branch
    %489 = sbr.rel (0) target = $region25
  $region24: #{dvsa_forward.1} parent=0 // pred_region
    _
  $region25: #{dvsa_forward.1} parent=0 // pred_fallthru
    _

</llo_original>
